<compile_context>
chip_gen: v7x
topology: tpu7x:2x2x1
jax: 0.10.0
libtpu: 0.0.40
codegen_flags: <defaults>
</compile_context>

<pallas_src>
import jax
import jax.numpy as jnp
import numpy as np
from jax.experimental import pallas as pl
from jax.experimental.pallas import tpu as pltpu


def _round_up(x, m):
    return ((x + m - 1) // m) * m


def conv_matmul_kernel(x_ref, w_ref, b_ref, o_ref):
    # x_ref: (TB, C_in*L) bf16    w_ref: (C_in*L, N_pad) bf16
    # b_ref: (1, N_pad) f32       o_ref: (TB, N_pad) f32
    acc = jnp.dot(x_ref[...], w_ref[...], preferred_element_type=jnp.float32)
    o_ref[...] = (acc + b_ref[...]).astype(o_ref.dtype)


def conv1d(x, weight, bias, *, block_b=256):
    """x: (B, C_in, L), weight: (C_out, C_in, K), bias: (C_out,) -> (B, C_out, L_out)."""
    B, C_in, L = x.shape
    C_out, _, K = weight.shape
    L_out = L - K + 1

    N = C_out * L_out
    N_pad = _round_up(N, 128)                 # lane-dense, unmasked output stores
    CL = C_in * L                             # matmul contraction width

    # Batch tile: multiple of 8 (sublane), capped at block_b; pad B up to it.
    TB = min(block_b, _round_up(B, 8))
    TB = _round_up(TB, 8)
    B_pad = _round_up(B, TB)
    grid_b = B_pad // TB

    # ---- one-time weight/bias prep (wrapper-side layout plumbing) ----
    # S[k, p, l] = 1 iff p == l + k  (valid-conv tap selector)
    S = jnp.stack([jnp.eye(L, L_out, k=-k, dtype=jnp.float32) for k in range(K)], axis=0)
    # W_mat[ci*L + p, co*L_out + l] = weight[co, ci, p - l] if 0 <= p-l < K else 0
    w_mat = jnp.einsum("ock,kpl->cpol", weight.astype(jnp.float32), S).reshape(CL, N)
    w_mat = jnp.pad(w_mat, ((0, 0), (0, N_pad - N))).astype(jnp.bfloat16)

    b_row = jnp.broadcast_to(bias.astype(jnp.float32)[:, None], (C_out, L_out)).reshape(1, N)
    b_row = jnp.pad(b_row, ((0, 0), (0, N_pad - N)))          # (1, N_pad) f32

    # ---- input: free row-major reshape, zero-pad batch, bf16 feed ----
    x_flat = x.reshape(B, CL)
    if B_pad != B:
        x_flat = jnp.pad(x_flat, ((0, B_pad - B), (0, 0)))
    x_flat = x_flat.astype(jnp.bfloat16)

    out = pl.pallas_call(
        conv_matmul_kernel,
        out_shape=jax.ShapeDtypeStruct((B_pad, N_pad), jnp.float32),
        grid=(grid_b,),
        in_specs=[
            pl.BlockSpec((TB, CL), lambda b: (b, 0)),        # streamed batch slab
            pl.BlockSpec((CL, N_pad), lambda b: (0, 0)),     # weights resident
            pl.BlockSpec((1, N_pad), lambda b: (0, 0)),      # bias resident
        ],
        out_specs=pl.BlockSpec((TB, N_pad), lambda b: (b, 0)),
        compiler_params=pltpu.CompilerParams(
            dimension_semantics=("parallel",),               # megacore-shard batch tiles
            vmem_limit_bytes=32 * 1024 * 1024,               # fits v5e/v6e/v7x scoped VMEM
        ),
    )(x_flat, w_mat, b_row)

    # Slice off batch / lane padding; free reshape back to (B, C_out, L_out).
    return out[:B, :N].reshape(B, C_out, L_out)


# ---------------------------- pure-JAX reference ----------------------------
def reference_conv1d(x, weight, bias):
    out = jax.lax.conv_general_dilated(
        x, weight,
        window_strides=(1,),
        padding="VALID",
        dimension_numbers=("NCH", "OIH", "NCH"))
    return out + bias[None, :, None]


if __name__ == "__main__":
    # Small shapes consistent with the module: batch=2, in_channels=4,
    # out_channels=8, length=16, kernel_size=5 -> L_out = 12.
    B, C_in, C_out, L, K = 2, 4, 8, 16, 5

    key = jax.random.PRNGKey(0)
    kx, kw, kb = jax.random.split(key, 3)
    x = jax.random.normal(kx, (B, C_in, L), dtype=jnp.float32)
    weight = (0.1 * jax.random.normal(kw, (C_out, C_in, K))).astype(jnp.float32)
    bias = (0.1 * jax.random.normal(kb, (C_out,))).astype(jnp.float32)

    out = conv1d(x, weight, bias)
    jax.block_until_ready(out)

    ref = reference_conv1d(x, weight, bias)
    # bf16 MXU inputs with f32 accumulation: loosen tolerance vs pure-f32 ref.
    np.testing.assert_allclose(np.asarray(out), np.asarray(ref), rtol=2e-2, atol=2e-2)

    print("KERNEL_OK")
</pallas_src>

<mosaic_0001>
module attributes {stable_mosaic.version = 11 : i64} {
  func.func @conv_matmul_kernel(%arg0: i32, %arg1: memref<8x64xbf16, #tpu.memory_space<vmem>>, %arg2: memref<64x128xbf16, #tpu.memory_space<vmem>>, %arg3: memref<1x128xf32, #tpu.memory_space<vmem>>, %arg4: memref<8x128xf32, #tpu.memory_space<vmem>>) attributes {dimension_semantics = [#tpu.dimension_semantics<parallel>], iteration_bounds = array<i64: 1>, scalar_prefetch = 0 : i64, scratch_operands = 0 : i64, tpu.core_type = #tpu.core_type<tc>, window_params = [{transform_indices = @transform_0, window_bounds = array<i64: 8, 64>}, {pipeline_mode = #tpu.pipeline_mode<synchronous>, transform_indices = @transform_1, window_bounds = array<i64: 64, 128>}, {pipeline_mode = #tpu.pipeline_mode<synchronous>, transform_indices = @transform_2, window_bounds = array<i64: 1, 128>}, {transform_indices = @transform_3, window_bounds = array<i64: 8, 128>}]} {
    %c0 = arith.constant 0 : index
    %c0_0 = arith.constant 0 : index
    %0 = vector.load %arg1[%c0, %c0_0] : memref<8x64xbf16, #tpu.memory_space<vmem>>, vector<8x64xbf16>
    %c0_1 = arith.constant 0 : index
    %c0_2 = arith.constant 0 : index
    %1 = vector.load %arg2[%c0_1, %c0_2] : memref<64x128xbf16, #tpu.memory_space<vmem>>, vector<64x128xbf16>
    %cst = arith.constant dense<0.000000e+00> : vector<8x128xf32>
    %2 = tpu.matmul %0, %1, %cst {dimension_numbers = #tpu.dot_dimension_numbers<[1], [0], [0], [1], [0, 0, 1, 1], [], []>} : vector<8x64xbf16>, vector<64x128xbf16>, vector<8x128xf32> -> vector<8x128xf32>
    %c0_3 = arith.constant 0 : index
    %c0_4 = arith.constant 0 : index
    %3 = vector.load %arg3[%c0_3, %c0_4] : memref<1x128xf32, #tpu.memory_space<vmem>>, vector<1x128xf32>
    %4 = vector.broadcast %3 : vector<1x128xf32> to vector<8x128xf32>
    %5 = arith.addf %2, %4 : vector<8x128xf32>
    %c0_5 = arith.constant 0 : index
    %c0_6 = arith.constant 0 : index
    %6 = vector.load %arg4[%c0_5, %c0_6] : memref<8x128xf32, #tpu.memory_space<vmem>>, vector<8x128xf32>
    tpu.vector_store %arg4[%c0_5, %c0_6], %5 {strides = array<i32>} : memref<8x128xf32, #tpu.memory_space<vmem>>, vector<8x128xf32>,
    return
  }
  func.func @transform_0(%arg0: i32) -> (i32, i32) {
    %c0_i32 = arith.constant 0 : i32
    %c0_i32_0 = arith.constant 0 : i32
    return %arg0, %c0_i32 : i32, i32
  }
  func.func @transform_1(%arg0: i32) -> (i32, i32) {
    %c0_i32 = arith.constant 0 : i32
    %c0_i32_0 = arith.constant 0 : i32
    %c0_i32_1 = arith.constant 0 : i32
    return %c0_i32, %c0_i32_0 : i32, i32
  }
  func.func @transform_2(%arg0: i32) -> (i32, i32) {
    %c0_i32 = arith.constant 0 : i32
    %c0_i32_0 = arith.constant 0 : i32
    %c0_i32_1 = arith.constant 0 : i32
    return %c0_i32, %c0_i32_0 : i32, i32
  }
  func.func @transform_3(%arg0: i32) -> (i32, i32) {
    %c0_i32 = arith.constant 0 : i32
    %c0_i32_0 = arith.constant 0 : i32
    return %arg0, %c0_i32 : i32, i32
  }
}

</mosaic_0001>

<llo_original>
// kernel: tpu_custom_call.1
$region0: #{tpu_custom_call.1}
  #allocation0 [shape = 'u32[]', space=smem, size = 0x4, offset = 0x4, fixed_abs, tag = 'smem constant byte address 0x4 - core index']
  #allocation1 [shape = 'u32[144,128]{1,0:T(1,128)}', space=vmem, size = 0x12000, scoped, tag = 'internal scratch']
  %s0 = inlined_call_operand.hbm [shape: bf16[8,64], index: 0, kind: input, shape index: {}]
  %s1 = inlined_call_operand.hbm [shape: bf16[64,128], index: 1, kind: input, shape index: {}]
  %s2 = inlined_call_operand.vmem [shape: f32[1,128], index: 2, kind: input, shape index: {}]
  %s3 = inlined_call_operand.hbm [shape: f32[8,128], index: 3, kind: output, shape index: {}]
  %s4 = sld [smem:[#allocation0]]
  $region30: #{tpu_custom_call.1} parent=0
    _
  %s6 = ssub.s32 1, %s4
  %s7 = scalar_select 0, %s6, %s4
  $region1: #{tpu_custom_call.1} parent=0
    #allocation2 [shape = 'u8[2048]{0}', space=vmem, size = 0x800, scoped, tag = 'input window, operand 0, single buffered']
    #allocation3 [shape = 's32[1]{0}', space=sflag, size = 0x4, scoped, tag = 'scoped memory for tpu_custom_call.1']
    #allocation4 [shape = 's32[1]{0}', space=sflag, size = 0x4, scoped, tag = 'scoped memory for tpu_custom_call.1']
    #allocation5 [shape = 'u8[16384]{0}', space=vmem, size = 0x4000, scoped, tag = 'input window, operand 1, single buffered']
    #allocation6 [shape = 's32[1]{0}', space=sflag, size = 0x4, scoped, tag = 'scoped memory for tpu_custom_call.1']
    #allocation7 [shape = 'u8[4096]{0}', space=vmem, size = 0x1000, scoped, tag = 'output window, operand 0, single buffered']
    %8 = vsyncpa [#allocation3], 0
    %9 = vsyncpa [#allocation6], 0
    %10 = vsyncpa [#allocation4], 0
    // Predicated region
    $region2: #{tpu_custom_call.1} parent=1 // pred_check
      _
    $region3: #{tpu_custom_call.1} parent=1 // pred_check_branch
      %12 = sbr.rel (0) target = $region5
    $region4: #{tpu_custom_call.1} parent=1 // pred_region
      %s14 = ssub.s32 64, 64
      %15 = vsyncadd [#allocation3], %s14
      %s17 = sshll.u32 [#allocation2], 4
      %s18 = int_to_ptr.vmem [resolvable:$true] %s17
      %20 = dma.hbm_to_vmem [thread:$0]  %s0, 64, %s18, [#allocation3]
    $region5: #{tpu_custom_call.1} parent=1 // pred_fallthru
      _
    // Predicated region
    $region6: #{tpu_custom_call.1} parent=1 // pred_check
      _
    $region7: #{tpu_custom_call.1} parent=1 // pred_check_branch
      %22 = sbr.rel (0) target = $region9
    $region8: #{tpu_custom_call.1} parent=1 // pred_region
      %s24 = ssub.s32 512, 512
      %25 = vsyncadd [#allocation6], %s24
      %s26 = sshll.u32 [#allocation5], 4
      %s27 = int_to_ptr.vmem [resolvable:$true] %s26
      %32 = dma.hbm_to_vmem [thread:$0]  %s1, 512, %s27, [#allocation6], 64, 64, 4
    $region9: #{tpu_custom_call.1} parent=1 // pred_fallthru
      _
    // Predicated region
    $region10: #{tpu_custom_call.1} parent=1 // pred_check
      _
    $region11: #{tpu_custom_call.1} parent=1 // pred_check_branch
      %34 = sbr.rel (0) target = $region13
    $region12: #{tpu_custom_call.1} parent=1 // pred_region
      _
    $region13: #{tpu_custom_call.1} parent=1 // pred_fallthru
      _
    // Predicated region
    $region14: #{tpu_custom_call.1} parent=1 // pred_check
      _
    $region15: #{tpu_custom_call.1} parent=1 // pred_check_branch
      %36 = sbr.rel (0) target = $region17
    $region16: #{tpu_custom_call.1} parent=1 // pred_region
      %37 = dma.done [#allocation3], 64
    $region17: #{tpu_custom_call.1} parent=1 // pred_fallthru
      _
    // Predicated region
    $region18: #{tpu_custom_call.1} parent=1 // pred_check
      _
    $region19: #{tpu_custom_call.1} parent=1 // pred_check_branch
      %39 = sbr.rel (0) target = $region21
    $region20: #{tpu_custom_call.1} parent=1 // pred_region
      %40 = dma.done [#allocation6], 512
    $region21: #{tpu_custom_call.1} parent=1 // pred_fallthru
      _
    %v42 = vld [vmem:[#allocation2] sm:$0xf]
    %v43 = vld [vmem:[#allocation5] sm:$0xf]
    %v44 = vld [vmem:[#allocation5 + $0x4] sm:$0xf]
    %v45 = vld [vmem:[#allocation5 + $0x8] sm:$0xf]
    %v46 = vld [vmem:[#allocation5 + $0xc] sm:$0xf]
    %v47 = vld [vmem:[#allocation5 + $0x10] sm:$0xf]
    %v48 = vld [vmem:[#allocation5 + $0x14] sm:$0xf]
    %v49 = vld [vmem:[#allocation5 + $0x18] sm:$0xf]
    %v50 = vld [vmem:[#allocation5 + $0x1c] sm:$0xf]
    %v51 = vld [vmem:[%s2] sm:$0x1]
    %v53 = vlaneseq
    %v54 = vshrl.u32 %v53, 7
    %v55 = vsub.s32 0, %v54
    %v56 = vrot.slane %v51, %v55
    %v66 = vunpack.c.l.b16 %v43
    %v67 = vunpack.c.l.b16 %v44
    %v68 = vunpack.c.l.b16 %v45
    %v69 = vunpack.c.l.b16 %v46
    %v70 = vunpack.c.l.b16 %v47
    %v71 = vunpack.c.l.b16 %v48
    %v72 = vunpack.c.l.b16 %v49
    %v73 = vunpack.c.l.b16 %v50
    %v74 = vpack.c.b16 %v67, %v66
    %v75 = vpack.c.b16 %v69, %v68
    %v76 = vpack.c.b16 %v71, %v70
    %v77 = vpack.c.b16 %v73, %v72
    %vm82 = vcmask 523264
    %v84 = vsel %vm82, %v42, 0
    %86 = vmatprep.subr.bf16.mxu0 0
    %87 = vmatpush1.bf16.msra.mxu0 %v74
    %88 = vmatprep.subr.bf16.mxu0 0
    %89 = vmatpush1.bf16.msra.mxu0 %v75
    %90 = vmatprep.subr.bf16.mxu0 0
    %91 = vmatpush1.bf16.msra.mxu0 %v76
    %92 = vmatprep.subr.bf16.mxu0 0
    %93 = vmatpush1.bf16.msra.mxu0 %v77
    %94 = vmatprep.subr.bf16.mxu0 0
    %95 = vmatpush1.bf16.msra.mxu0 0
    %96 = vmatprep.subr.bf16.mxu0 0
    %97 = vmatpush1.bf16.msra.mxu0 0
    %98 = vmatprep.subr.bf16.mxu0 0
    %99 = vmatpush1.bf16.msra.mxu0 0
    %100 = vmatprep.subr.bf16.mxu0 0
    %101 = vmatpush1.bf16.msra.mxu0 0
    %102 = vmatprep.subr.bf16.mxu0 0
    %103 = vmatpush1.bf16.msra.mxu0 0
    %104 = vmatprep.subr.bf16.mxu0 0
    %105 = vmatpush1.bf16.msra.mxu0 0
    %106 = vmatprep.subr.bf16.mxu0 0
    %107 = vmatpush1.bf16.msra.mxu0 0
    %108 = vmatprep.subr.bf16.mxu0 0
    %109 = vmatpush1.bf16.msra.mxu0 0
    %110 = vmatprep.subr.bf16.mxu0 0
    %111 = vmatpush1.bf16.msra.mxu0 0
    %112 = vmatprep.subr.bf16.mxu0 0
    %113 = vmatpush1.bf16.msra.mxu0 0
    %114 = vmatprep.subr.bf16.mxu0 0
    %115 = vmatpush1.bf16.msra.mxu0 0
    %116 = vmatprep.subr.bf16.mxu0 0
    %117 = vmatpush1.bf16.msra.mxu0 0
    %118 = vmatprep.mubr.bf16.mxu0 0
    %119 = vmatmul.mubr.bf16.gmra.mrb[0].mxu0 %v84
    %v120 = vpop.f32.mrb[0].mxu0
    %v121 = vadd.f32 %v56, %v120
    %v122 = vpop.f32.mrb[0].mxu0
    %v123 = vpop.f32.mrb[0].mxu0
    %v124 = vpop.f32.mrb[0].mxu0
    %125 = vdwg.mxu0
    %126 = vst [vmem:[#allocation7] sm:$0xff] %v121
    // Predicated region
    $region22: #{tpu_custom_call.1} parent=1 // pred_check
      _
    $region23: #{tpu_custom_call.1} parent=1 // pred_check_branch
      %128 = sbr.rel (0) target = $region25
    $region24: #{tpu_custom_call.1} parent=1 // pred_region
      %s130 = ssub.s32 128, 128
      %131 = vsyncadd [#allocation4], %s130
      %s133 = sshll.u32 [#allocation7], 4
      %s134 = int_to_ptr.vmem [resolvable:$true] %s133
      %136 = dma.vmem_to_hbm [thread:$0]  %s134, 128, %s3, [#allocation4]
    $region25: #{tpu_custom_call.1} parent=1 // pred_fallthru
      _
    // Predicated region
    $region26: #{tpu_custom_call.1} parent=1 // pred_check
      _
    $region27: #{tpu_custom_call.1} parent=1 // pred_check_branch
      %138 = sbr.rel (0) target = $region29
    $region28: #{tpu_custom_call.1} parent=1 // pred_region
      %139 = dma.done [#allocation4], 128
    $region29: #{tpu_custom_call.1} parent=1 // pred_fallthru
      _
    %140 = vsyncpa [#allocation3], 1
    %141 = vsyncpa [#allocation6], 1
    %142 = vsyncpa [#allocation4], 1

</llo_original>
